<compile_context>
chip_gen: v7x
topology: tpu7x:2x2x1
jax: 0.10.0
libtpu: 0.0.40
codegen_flags: <defaults>
</compile_context>

<pallas_src>
import math

import jax
import jax.numpy as jnp
from jax.experimental import pallas as pl
from jax.experimental.pallas import tpu as pltpu

_LANE = 128
_SUBLANE = 8
_MAX_FOLD_WIDTH = 4 * _LANE            # fold small dims up to 512 lanes
_TARGET_STEP_BYTES = 2 * 1024 * 1024   # aim for >= ~2 MiB of (x + out) per step
_MAX_TILE_ROWS = 4096


def _cdiv(a, b):
    return -(-a // b)


def _round_up(v, m):
    return ((v + m - 1) // m) * m


# -----------------------------------------------------------------------------
# Kernels
# -----------------------------------------------------------------------------

def _affine_fused_kernel(x_ref, a_ref, scale_ref, mu_ref, o_ref):
    """o = exp(phi)*x + x @ A + mu, A = W @ W^T (grid-invariant, resident).

    The diagonal exp(phi) term is applied as an f32 VPU multiply (free under
    the matmul) so A may be held in bf16 without quantising the dominant term.
    The x -> matmul-dtype cast happens here, not via an extra HBM pass.
    """
    x = x_ref[...]
    mm = jnp.dot(x.astype(a_ref.dtype), a_ref[...],
                 preferred_element_type=jnp.float32)
    o_ref[...] = (scale_ref[...] * x.astype(jnp.float32) + mm
                  + mu_ref[...]).astype(o_ref.dtype)


def _affine_lowrank_kernel(x_ref, w_ref, wt_ref, scale_ref, mu_ref, o_ref):
    """o = exp(phi)*x + (x @ W) @ W^T + mu, with W^T precomputed in the wrapper
    so both matmuls are plain row-major MXU matmuls (no transposed-RHS path)."""
    x = x_ref[...]
    xw = jnp.dot(x.astype(w_ref.dtype), w_ref[...],
                 preferred_element_type=jnp.float32)
    if wt_ref.dtype != jnp.float32:        # only cast when the MXU runs bf16
        xw = xw.astype(wt_ref.dtype)
    low = jnp.dot(xw, wt_ref[...], preferred_element_type=jnp.float32)
    o_ref[...] = (scale_ref[...] * x.astype(jnp.float32) + low
                  + mu_ref[...]).astype(o_ref.dtype)


# -----------------------------------------------------------------------------
# Single-buffered invariant operands (pipeline_mode=pl.Buffered(1)), probed once
# -----------------------------------------------------------------------------

def _probe_kernel(a_ref, x_ref, o_ref):
    o_ref[...] = x_ref[...] + a_ref[...]


_SINGLE_BUFFER_OK = None


def _single_buffer_ok():
    """Probe whether pipeline_mode=pl.Buffered(1) works for a grid-invariant
    input of a top-level pallas_call on this Pallas/Mosaic build."""
    global _SINGLE_BUFFER_OK
    if _SINGLE_BUFFER_OK is None:
        try:
            inv = pl.BlockSpec((_SUBLANE, _LANE), lambda i: (0, 0),
                               pipeline_mode=pl.Buffered(1))
            a = jnp.full((_SUBLANE, _LANE), 2.0, jnp.float32)
            x = jnp.arange(2 * _SUBLANE * _LANE,
                           dtype=jnp.float32).reshape(2 * _SUBLANE, _LANE)
            out = pl.pallas_call(
                _probe_kernel,
                out_shape=jax.ShapeDtypeStruct(x.shape, x.dtype),
                grid_spec=pltpu.PrefetchScalarGridSpec(
                    num_scalar_prefetch=0,
                    grid=(2,),
                    in_specs=[inv,
                              pl.BlockSpec((_SUBLANE, _LANE), lambda i: (i, 0))],
                    out_specs=pl.BlockSpec((_SUBLANE, _LANE), lambda i: (i, 0)),
                ),
            )(a, x)
            _SINGLE_BUFFER_OK = bool(jnp.allclose(out, x + 2.0))
        except Exception:  # any failure -> fall back to default double buffering
            _SINGLE_BUFFER_OK = False
    return _SINGLE_BUFFER_OK


def _invariant_spec(shape):
    """BlockSpec for a grid-invariant operand (fetched once, revisited every
    grid step).  Single-buffered when supported so e.g. an 8 MiB A does not
    cost 16 MiB of VMEM on v7x; otherwise default (double) buffering."""
    index_map = lambda i: (0,) * len(shape)
    if _single_buffer_ok():
        return pl.BlockSpec(shape, index_map, pipeline_mode=pl.Buffered(1))
    return pl.BlockSpec(shape, index_map)


# -----------------------------------------------------------------------------
# Sizing heuristics
# -----------------------------------------------------------------------------

def _vmem_limit_bytes():
    """Per-generation scoped-VMEM limit: ~half of physical VMEM, capped at
    64 MiB (=> ~64 MiB on v5e/v6e's 128 MiB, ~32 MiB on v7x's 64 MiB)."""
    try:
        phys = int(pltpu.get_tpu_info().vmem_capacity_bytes)
    except Exception:  # no device info / older API -> conservative (v7x) value
        phys = 64 * 1024 * 1024
    return max(16 * 1024 * 1024, min(phys // 2, 64 * 1024 * 1024))


def _choose_fold(dim, n):
    """Largest fold f with f | N (free contiguous reshape), 128 | f*dim
    (lane-dense), and f*dim <= 512 (block-diagonal A stays tiny)."""
    if dim >= _LANE:
        return 1
    base = _LANE // math.gcd(dim, _LANE)
    if base * dim > _MAX_FOLD_WIDTH:
        return 1
    best, f = 1, base
    while f * dim <= _MAX_FOLD_WIDTH:
        if n % f == 0:
            best = f
        f += base
    return best


def _choose_tile_rows(rows, width, in_isz, out_isz, avail_vmem):
    """Row tile: >= ~2 MiB of (x + out) per grid step, capped at 4096 rows,
    double-buffered tiles fit `avail_vmem`, and >= 2 grid steps (megacore)
    when there is enough work.  Ragged last blocks are write-masked."""
    if rows <= _SUBLANE:
        return rows                       # single full-array block (legal)
    step_row = width * (in_isz + out_isz)             # single-buffered x + out
    buf_row = 2 * step_row                             # double-buffered
    target = _round_up(max(_cdiv(_TARGET_STEP_BYTES, step_row), _SUBLANE),
                       _SUBLANE)
    vmem_rows = max(_SUBLANE,
                    (avail_vmem // buf_row) // _SUBLANE * _SUBLANE)
    tile = min(_MAX_TILE_ROWS, vmem_rows, target, _round_up(rows, _SUBLANE))
    if tile >= rows:                      # keep >= 2 steps for the megacore
        tile = min(tile, _round_up(_cdiv(rows, 2), _SUBLANE))
    return max(_SUBLANE, (tile // _SUBLANE) * _SUBLANE)


def _sanitize_tile(tile, rows):
    if rows <= _SUBLANE:
        return rows
    tile = max(_SUBLANE, min(int(tile), _round_up(rows, _SUBLANE)))
    return (tile // _SUBLANE) * _SUBLANE


# -----------------------------------------------------------------------------
# Wrapper
# -----------------------------------------------------------------------------

def affine_forward(x, W, phi, mu, *, tile_rows=None, use_bf16_matmul=False):
    """Pallas TPU implementation of Affine.forward:
        y = exp(phi)[None] * x + x @ W @ W^T + mu[None]

    x: [N, dim]; W: [dim, rank]; phi, mu: [dim].
    """
    N, dim = x.shape
    rank = W.shape[1]
    out_dtype = x.dtype
    x_isz = jnp.dtype(x.dtype).itemsize
    out_isz = jnp.dtype(out_dtype).itemsize
    mm_dtype = jnp.bfloat16 if use_bf16_matmul else jnp.float32
    mm_isz = jnp.dtype(mm_dtype).itemsize

    scale = jnp.exp(phi.astype(jnp.float32)).reshape(1, dim)   # exp(phi), f32
    mu_row = mu.astype(jnp.float32).reshape(1, dim)

    vmem_limit = _vmem_limit_bytes()
    # A may still be double-buffered if Buffered(1) is unsupported -> keep //4.
    invariant_cap = vmem_limit // 4

    fold = _choose_fold(dim, N)
    width = fold * dim
    a_bytes = width * width * mm_isz

    # FLOPs-aware choice: fused does 2*N*dim^2, low-rank 4*N*dim*rank, so take
    # low-rank whenever 2*rank < dim.  That is also exactly when W (+ W^T) is
    # smaller than A, so it removes the A-prefetch head bubble on short grids.
    fused = (fold > 1) or (dim <= 2 * rank and a_bytes <= invariant_cap)

    params = pltpu.CompilerParams(dimension_semantics=("parallel",),
                                  vmem_limit_bytes=vmem_limit)

    if fused:
        Wf = W.astype(jnp.float32)
        A = Wf @ Wf.T                       # diag(exp(phi)) applied in-kernel, f32
        if fold > 1:
            # Block-diagonal fold: x [N, dim] -> [N/fold, fold*dim] is a free,
            # contiguous reshape; A -> block_diag(A,...,A); scale/mu are tiled.
            A = jnp.kron(jnp.eye(fold, dtype=jnp.float32), A)
            scale_in = jnp.tile(scale, (1, fold))
            mu_in = jnp.tile(mu_row, (1, fold))
            x_in = x.reshape(N // fold, width)
        else:
            scale_in, mu_in, x_in = scale, mu_row, x
        A = A.astype(mm_dtype)
        rows = x_in.shape[0]

        inv_bytes = 2 * (a_bytes + 2 * width * 4)   # worst case double-buffered
        avail = max(vmem_limit - inv_bytes - (2 << 20), 4 << 20)
        tile = _sanitize_tile(
            tile_rows if tile_rows is not None
            else _choose_tile_rows(rows, width, x_isz, out_isz, avail), rows)
        grid = (_cdiv(rows, tile),)

        cost = pl.CostEstimate(
            flops=2 * rows * width * width + 3 * rows * width,
            transcendentals=0,
            bytes_accessed=(rows * width * (x_isz + out_isz)
                            + width * width * mm_isz + 2 * width * 4))

        out = pl.pallas_call(
            _affine_fused_kernel,
            out_shape=jax.ShapeDtypeStruct((rows, width), out_dtype),
            grid_spec=pltpu.PrefetchScalarGridSpec(
                num_scalar_prefetch=0,
                grid=grid,
                in_specs=[
                    pl.BlockSpec((tile, width), lambda i: (i, 0)),  # x (streamed)
                    _invariant_spec((width, width)),                # A = W W^T
                    _invariant_spec((1, width)),                    # exp(phi)
                    _invariant_spec((1, width)),                    # mu
                ],
                out_specs=pl.BlockSpec((tile, width), lambda i: (i, 0)),
            ),
            compiler_params=params,
            cost_estimate=cost,
        )(x_in, A, scale_in, mu_in)
        return out.reshape(N, dim) if fold > 1 else out

    # ---- Low-rank path: o = exp(phi)*x + (x @ W) @ W^T + mu -----------------
    Wm = W.astype(mm_dtype)
    Wt = Wm.T                                # tiny one-time wrapper transpose
    inv_bytes = 2 * (2 * dim * rank * mm_isz + 2 * dim * 4)
    avail = max(vmem_limit - inv_bytes - (2 << 20), 4 << 20)
    tile = _sanitize_tile(
        tile_rows if tile_rows is not None
        else _choose_tile_rows(N, dim, x_isz, out_isz, avail), N)
    grid = (_cdiv(N, tile),)

    cost = pl.CostEstimate(
        flops=4 * N * dim * rank + 3 * N * dim,
        transcendentals=0,
        bytes_accessed=(N * dim * (x_isz + out_isz)
                        + 2 * dim * rank * mm_isz + 2 * dim * 4))

    return pl.pallas_call(
        _affine_lowrank_kernel,
        out_shape=jax.ShapeDtypeStruct((N, dim), out_dtype),
        grid_spec=pltpu.PrefetchScalarGridSpec(
            num_scalar_prefetch=0,
            grid=grid,
            in_specs=[
                pl.BlockSpec((tile, dim), lambda i: (i, 0)),        # x (streamed)
                _invariant_spec((dim, rank)),                       # W
                _invariant_spec((rank, dim)),                       # W^T
                _invariant_spec((1, dim)),                          # exp(phi)
                _invariant_spec((1, dim)),                          # mu
            ],
            out_specs=pl.BlockSpec((tile, dim), lambda i: (i, 0)),
        ),
        compiler_params=params,
        cost_estimate=cost,
    )(x, Wm, Wt, scale, mu_row)


# -----------------------------------------------------------------------------
# Self-test
# -----------------------------------------------------------------------------

if __name__ == "__main__":
    def reference(x, W, phi, mu):
        return jnp.exp(phi)[None] * x + x @ W @ W.T + mu[None]

    key = jax.random.PRNGKey(0)
    k_mu, k_w, k_phi, k_x = jax.random.split(key, 4)

    # Small shapes consistent with the module's [N, dim] forward contract;
    # parameter init mirrors the PyTorch __init__ (randn * 0.001).
    N, dim, rank = 8, 32, 16
    mu = jax.random.normal(k_mu, (dim,), dtype=jnp.float32) * 0.001
    W = jax.random.normal(k_w, (dim, rank), dtype=jnp.float32) * 0.001
    phi = jax.random.normal(k_phi, (dim,), dtype=jnp.float32) * 0.001
    x = jax.random.normal(k_x, (N, dim), dtype=jnp.float32)

    y = jax.block_until_ready(affine_forward(x, W, phi, mu))
    assert jnp.allclose(y, reference(x, W, phi, mu), atol=1e-5, rtol=1e-5), "fused"

    # Larger N: folded lane-dense layout, multi-step pipelined parallel grid.
    x2 = jax.random.normal(jax.random.PRNGKey(1), (4096, dim), dtype=jnp.float32)
    y2 = jax.block_until_ready(affine_forward(x2, W, phi, mu))
    assert jnp.allclose(y2, reference(x2, W, phi, mu), atol=1e-5, rtol=1e-5), "tiled"

    # Ragged N: last row block is write-masked, no wrapper pad/slice copies.
    x3 = jax.random.normal(jax.random.PRNGKey(2), (1000, dim), dtype=jnp.float32)
    y3 = jax.block_until_ready(affine_forward(x3, W, phi, mu))
    assert jnp.allclose(y3, reference(x3, W, phi, mu), atol=1e-5, rtol=1e-5), "ragged"

    # N not divisible by the fold factor: unfolded fused path, lane dim == dim.
    x4 = jax.random.normal(jax.random.PRNGKey(3), (10, dim), dtype=jnp.float32)
    y4 = jax.block_until_ready(affine_forward(x4, W, phi, mu))
    assert jnp.allclose(y4, reference(x4, W, phi, mu), atol=1e-5, rtol=1e-5), "unfolded"

    # Low-rank path (2*rank < dim), non-128-multiple dim, precomputed W^T.
    dim5, rank5, n5 = 200, 16, 64
    k_mu5, k_w5, k_phi5, k_x5 = jax.random.split(jax.random.PRNGKey(4), 4)
    mu5 = jax.random.normal(k_mu5, (dim5,), dtype=jnp.float32) * 0.001
    W5 = jax.random.normal(k_w5, (dim5, rank5), dtype=jnp.float32) * 0.001
    phi5 = jax.random.normal(k_phi5, (dim5,), dtype=jnp.float32) * 0.001
    x5 = jax.random.normal(k_x5, (n5, dim5), dtype=jnp.float32)
    y5 = jax.block_until_ready(affine_forward(x5, W5, phi5, mu5))
    assert jnp.allclose(y5, reference(x5, W5, phi5, mu5), atol=1e-5, rtol=1e-5), "low-rank"

    # bf16 MXU path: only W W^T is quantised; exp(phi)*x stays exact in f32.
    W6 = jax.random.normal(k_w, (dim, rank), dtype=jnp.float32) * 0.1
    x6 = jax.random.normal(jax.random.PRNGKey(5), (256, dim), dtype=jnp.float32)
    y6 = jax.block_until_ready(affine_forward(x6, W6, phi, mu, use_bf16_matmul=True))
    assert jnp.allclose(y6, reference(x6, W6, phi, mu), atol=3e-2, rtol=3e-2), "bf16"

    print("KERNEL_OK")
</pallas_src>

<mosaic_0001>
module attributes {stable_mosaic.version = 11 : i64} {
  func.func @_probe_kernel(%arg0: i32, %arg1: memref<8x128xf32, #tpu.memory_space<vmem>>, %arg2: memref<8x128xf32, #tpu.memory_space<vmem>>, %arg3: memref<8x128xf32, #tpu.memory_space<vmem>>) attributes {dimension_semantics = [#tpu.dimension_semantics<arbitrary>], iteration_bounds = array<i64: 2>, scalar_prefetch = 0 : i64, scratch_operands = 0 : i64, tpu.core_type = #tpu.core_type<tc>, window_params = [{pipeline_mode = #tpu.pipeline_mode<synchronous>, transform_indices = @transform_0, window_bounds = array<i64: 8, 128>}, {transform_indices = @transform_1, window_bounds = array<i64: 8, 128>}, {transform_indices = @transform_2, window_bounds = array<i64: 8, 128>}]} {
    %c0 = arith.constant 0 : index
    %c0_0 = arith.constant 0 : index
    %0 = vector.load %arg2[%c0, %c0_0] : memref<8x128xf32, #tpu.memory_space<vmem>>, vector<8x128xf32>
    %c0_1 = arith.constant 0 : index
    %c0_2 = arith.constant 0 : index
    %1 = vector.load %arg1[%c0_1, %c0_2] : memref<8x128xf32, #tpu.memory_space<vmem>>, vector<8x128xf32>
    %2 = arith.addf %0, %1 : vector<8x128xf32>
    %c0_3 = arith.constant 0 : index
    %c0_4 = arith.constant 0 : index
    %3 = vector.load %arg3[%c0_3, %c0_4] : memref<8x128xf32, #tpu.memory_space<vmem>>, vector<8x128xf32>
    tpu.vector_store %arg3[%c0_3, %c0_4], %2 {strides = array<i32>} : memref<8x128xf32, #tpu.memory_space<vmem>>, vector<8x128xf32>,
    return
  }
  func.func @transform_0(%arg0: i32) -> (i32, i32) {
    %c0_i32 = arith.constant 0 : i32
    %c0_i32_0 = arith.constant 0 : i32
    %c0_i32_1 = arith.constant 0 : i32
    return %c0_i32, %c0_i32_0 : i32, i32
  }
  func.func @transform_1(%arg0: i32) -> (i32, i32) {
    %c0_i32 = arith.constant 0 : i32
    %c0_i32_0 = arith.constant 0 : i32
    return %arg0, %c0_i32 : i32, i32
  }
  func.func @transform_2(%arg0: i32) -> (i32, i32) {
    %c0_i32 = arith.constant 0 : i32
    %c0_i32_0 = arith.constant 0 : i32
    return %arg0, %c0_i32 : i32, i32
  }
}

module attributes {stable_mosaic.version = 11 : i64} {
  func.func @_affine_fused_kernel(%arg0: i32, %arg1: memref<1x256xf32, #tpu.memory_space<vmem>>, %arg2: memref<256x256xf32, #tpu.memory_space<vmem>>, %arg3: memref<1x256xf32, #tpu.memory_space<vmem>>, %arg4: memref<1x256xf32, #tpu.memory_space<vmem>>, %arg5: memref<1x256xf32, #tpu.memory_space<vmem>>) attributes {dimension_semantics = [#tpu.dimension_semantics<parallel>], iteration_bounds = array<i64: 1>, scalar_prefetch = 0 : i64, scratch_operands = 0 : i64, tpu.core_type = #tpu.core_type<tc>, window_params = [{transform_indices = @transform_0, window_bounds = array<i64: 1, 256>}, {pipeline_mode = #tpu.pipeline_mode<synchronous>, transform_indices = @transform_1, window_bounds = array<i64: 256, 256>}, {pipeline_mode = #tpu.pipeline_mode<synchronous>, transform_indices = @transform_2, window_bounds = array<i64: 1, 256>}, {pipeline_mode = #tpu.pipeline_mode<synchronous>, transform_indices = @transform_3, window_bounds = array<i64: 1, 256>}, {transform_indices = @transform_4, window_bounds = array<i64: 1, 256>}]} {
    %c0 = arith.constant 0 : index
    %c0_0 = arith.constant 0 : index
    %0 = vector.load %arg1[%c0, %c0_0] : memref<1x256xf32, #tpu.memory_space<vmem>>, vector<1x256xf32>
    %c0_1 = arith.constant 0 : index
    %c0_2 = arith.constant 0 : index
    %1 = vector.load %arg2[%c0_1, %c0_2] : memref<256x256xf32, #tpu.memory_space<vmem>>, vector<256x256xf32>
    %cst = arith.constant dense<0.000000e+00> : vector<1x256xf32>
    %2 = tpu.matmul %0, %1, %cst {dimension_numbers = #tpu.dot_dimension_numbers<[1], [0], [0], [1], [0, 0, 1, 1], [], []>} : vector<1x256xf32>, vector<256x256xf32>, vector<1x256xf32> -> vector<1x256xf32>
    %c0_3 = arith.constant 0 : index
    %c0_4 = arith.constant 0 : index
    %3 = vector.load %arg3[%c0_3, %c0_4] : memref<1x256xf32, #tpu.memory_space<vmem>>, vector<1x256xf32>
    %4 = arith.mulf %3, %0 : vector<1x256xf32>
    %5 = arith.addf %4, %2 : vector<1x256xf32>
    %c0_5 = arith.constant 0 : index
    %c0_6 = arith.constant 0 : index
    %6 = vector.load %arg4[%c0_5, %c0_6] : memref<1x256xf32, #tpu.memory_space<vmem>>, vector<1x256xf32>
    %7 = arith.addf %5, %6 : vector<1x256xf32>
    %c0_7 = arith.constant 0 : index
    %c0_8 = arith.constant 0 : index
    %8 = vector.load %arg5[%c0_7, %c0_8] : memref<1x256xf32, #tpu.memory_space<vmem>>, vector<1x256xf32>
    tpu.vector_store %arg5[%c0_7, %c0_8], %7 {strides = array<i32>} : memref<1x256xf32, #tpu.memory_space<vmem>>, vector<1x256xf32>,
    return
  }
  func.func @transform_0(%arg0: i32) -> (i32, i32) {
    %c0_i32 = arith.constant 0 : i32
    %c0_i32_0 = arith.constant 0 : i32
    return %arg0, %c0_i32 : i32, i32
  }
  func.func @transform_1(%arg0: i32) -> (i32, i32) {
    %c0_i32 = arith.constant 0 : i32
    %c0_i32_0 = arith.constant 0 : i32
    %c0_i32_1 = arith.constant 0 : i32
    return %c0_i32, %c0_i32_0 : i32, i32
  }
  func.func @transform_2(%arg0: i32) -> (i32, i32) {
    %c0_i32 = arith.constant 0 : i32
    %c0_i32_0 = arith.constant 0 : i32
    %c0_i32_1 = arith.constant 0 : i32
    return %c0_i32, %c0_i32_0 : i32, i32
  }
  func.func @transform_3(%arg0: i32) -> (i32, i32) {
    %c0_i32 = arith.constant 0 : i32
    %c0_i32_0 = arith.constant 0 : i32
    %c0_i32_1 = arith.constant 0 : i32
    return %c0_i32, %c0_i32_0 : i32, i32
  }
  func.func @transform_4(%arg0: i32) -> (i32, i32) {
    %c0_i32 = arith.constant 0 : i32
    %c0_i32_0 = arith.constant 0 : i32
    return %arg0, %c0_i32 : i32, i32
  }
}

</mosaic_0001>

<llo_original>
// kernel: tpu_custom_call.1
$region0: #{tpu_custom_call.1}
  #allocation0 [shape = 'u32[]', space=smem, size = 0x4, offset = 0x4, fixed_abs, tag = 'smem constant byte address 0x4 - core index']
  #allocation1 [shape = 'u32[144,128]{1,0:T(1,128)}', space=vmem, size = 0x12000, scoped, tag = 'internal scratch']
  %s0 = inlined_call_operand.hbm [shape: f32[8,128], index: 0, kind: input, shape index: {}]
  %s1 = inlined_call_operand.hbm [shape: f32[16,128], index: 1, kind: input, shape index: {}]
  %s2 = inlined_call_operand.hbm [shape: f32[16,128], index: 2, kind: output, shape index: {}]
  %s3 = sld [smem:[#allocation0]]
  $region49: #{tpu_custom_call.1} parent=0
    _
  %s5 = ssub.s32 1, %s3
  %s6 = scalar_select 0, %s5, %s3
  $region1: #{tpu_custom_call.1} parent=0
    #allocation2 [shape = 'u8[4096]{0}', space=vmem, size = 0x1000, scoped, tag = 'input window, operand 0, single buffered']
    #allocation3 [shape = 's32[2]{0}', space=sflag, size = 0x8, scoped, tag = 'scoped memory for tpu_custom_call.1']
    #allocation4 [shape = 's32[2]{0}', space=sflag, size = 0x8, scoped, tag = 'scoped memory for tpu_custom_call.1']
    #allocation5 [shape = 'u8[8192]{0}', space=vmem, size = 0x2000, scoped, tag = 'input window, operand 1']
    #allocation6 [shape = 's32[2]{0}', space=sflag, size = 0x8, scoped, tag = 'scoped memory for tpu_custom_call.1']
    #allocation7 [shape = 'u8[8192]{0}', space=vmem, size = 0x2000, scoped, tag = 'output window, operand 0']
    %7 = vsyncpa [#allocation3], 0
    %8 = vsyncpa [#allocation6], 0
    %s9 = scalar_lea.sflag [#allocation6], 1
    %10 = vsyncpa %s9, 0
    %11 = vsyncpa [#allocation4], 0
    %s12 = scalar_lea.sflag [#allocation4], 1
    %13 = vsyncpa %s12, 0
    loop: start=0, step=1, limit=4
    $region2: #{tpu_custom_call.1} parent=1 // loop_pre_header
      _
    $region3: #{tpu_custom_call.1} parent=1 // loop_header
      %s15 = sphi 0, %s19
      %p16 = scmp.ge.s32.totalorder %s15, 4
      %s23 = sphi 0, %s23
      %s25 = sphi 0, %s23
      %s26 = sphi 0, %s25
      %s40 = sphi 0, %s26
      %s46 = sphi 0, %s48
      %s49 = sphi 0, %s46
      %s50 = sphi 0, %s49
      %s66 = sphi 0, %s50
      %s72 = sphi 0, %s74
      %s75 = sphi 0, %s72
      %s76 = sphi 0, %s75
      %s92 = sphi 0, %s76
    $region4: #{tpu_custom_call.1} parent=1 // loop_header_branch
      %18 = sbr.rel (%p16) target = $region8
    $region5: #{tpu_custom_call.1} parent=1 // loop_body
      %s20 = ssub.s32 %s15, 1
      %s21 = ssub.s32 %s15, 2
      %s22 = sadd.s32 %s15, 1
      %s24 = sadd.s32 %s23, 1
      %p27 = scmp.eq.s32.totalorder %s15, 1
      %p28 = scmp.ne.s32.totalorder %s23, %s25
      %p29 = scmp.eq.s32.totalorder %s15, 0
      %p30 = por %p28, %p29
      %p31 = scmp.ne.s32.totalorder %s23, %s25
      %p32 = scmp.eq.s32.totalorder %s20, 1
      %p33 = por %p31, %p32
      %p34 = scmp.ne.s32.totalorder %s25, %s26
      %p35 = scmp.eq.s32.totalorder %s20, 0
      %p36 = por %p34, %p35
      %p37 = scmp.ne.s32.totalorder %s25, %s26
      %p38 = scmp.eq.s32.totalorder %s21, 1
      %p39 = por %p37, %p38
      %p41 = scmp.ne.s32.totalorder %s26, %s40
      %p42 = scmp.eq.s32.totalorder %s21, 0
      %p43 = por %p41, %p42
      %s44 = ssub.s32 %s15, %s22
      %p45 = scmp.eq.s32.totalorder %s44, 0
      %s47 = sadd.s32 %s46, 1
      %s48 = scalar_select %p45, %s46, %s47
      %p51 = pneg %p45
      %p52 = scmp.eq.s32.totalorder %s15, 1
      %p53 = por %p51, %p52
      %p54 = scmp.ne.s32.totalorder %s46, %s49
      %p55 = scmp.eq.s32.totalorder %s15, 0
      %p56 = por %p54, %p55
      %p57 = scmp.ne.s32.totalorder %s46, %s49
      %p58 = scmp.eq.s32.totalorder %s20, 1
      %p59 = por %p57, %p58
      %p60 = scmp.ne.s32.totalorder %s49, %s50
      %p61 = scmp.eq.s32.totalorder %s20, 0
      %p62 = por %p60, %p61
      %p63 = scmp.ne.s32.totalorder %s49, %s50
      %p64 = scmp.eq.s32.totalorder %s21, 1
      %p65 = por %p63, %p64
      %p67 = scmp.ne.s32.totalorder %s50, %s66
      %p68 = scmp.eq.s32.totalorder %s21, 0
      %p69 = por %p67, %p68
      %s70 = ssub.s32 %s15, %s22
      %p71 = scmp.eq.s32.totalorder %s70, 0
      %s73 = sadd.s32 %s72, 1
      %s74 = scalar_select %p71, %s72, %s73
      %p77 = pneg %p71
      %p78 = scmp.eq.s32.totalorder %s15, 1
      %p79 = por %p77, %p78
      %p80 = scmp.ne.s32.totalorder %s72, %s75
      %p81 = scmp.eq.s32.totalorder %s15, 0
      %p82 = por %p80, %p81
      %p83 = scmp.ne.s32.totalorder %s72, %s75
      %p84 = scmp.eq.s32.totalorder %s20, 1
      %p85 = por %p83, %p84
      %p86 = scmp.ne.s32.totalorder %s75, %s76
      %p87 = scmp.eq.s32.totalorder %s20, 0
      %p88 = por %p86, %p87
      %p89 = scmp.ne.s32.totalorder %s75, %s76
      %p90 = scmp.eq.s32.totalorder %s21, 1
      %p91 = por %p89, %p90
      %p93 = scmp.ne.s32.totalorder %s76, %s92
      %p94 = scmp.eq.s32.totalorder %s21, 0
      %p95 = por %p93, %p94
      %p96 = scmp.le.s32.totalorder 1, %s15
      %p97 = scmp.lt.s32.totalorder %s15, 3
      %p98 = pnand %p96, %p97
      %p99 = pneg %p98
      // Predicated region
      $region9: #{tpu_custom_call.1} parent=5 // pred_check
        _
      $region10: #{tpu_custom_call.1} parent=5 // pred_check_branch
        %101 = sbr.rel (%p98) target = $region12
      $region11: #{tpu_custom_call.1} parent=5 // pred_region
        %s102 = ssub.s32 %s15, 1
        // Predicated region
        $region13: #{tpu_custom_call.1} parent=11 // pred_check
          %p103 = pneg %p36
        $region14: #{tpu_custom_call.1} parent=11 // pred_check_branch
          %105 = sbr.rel (%p103) target = $region16
        $region15: #{tpu_custom_call.1} parent=11 // pred_region
          %s107 = ssub.s32 128, 128
          %108 = vsyncadd [#allocation3], %s107
          %s110 = sshll.u32 [#allocation2], 4
          %s111 = int_to_ptr.vmem [resolvable:$true] %s110
          %113 = dma.hbm_to_vmem [thread:$0]  %s0, 128, %s111, [#allocation3]
        $region16: #{tpu_custom_call.1} parent=11 // pred_fallthru
          _
      $region12: #{tpu_custom_call.1} parent=5 // pred_fallthru
        _
      %p114 = scmp.lt.s32.totalorder %s15, 2
      // Predicated region
      $region17: #{tpu_custom_call.1} parent=5 // pred_check
        %p115 = pneg %p114
      $region18: #{tpu_custom_call.1} parent=5 // pred_check_branch
        %117 = sbr.rel (%p115) target = $region20
      $region19: #{tpu_custom_call.1} parent=5 // pred_region
        // Predicated region
        $region21: #{tpu_custom_call.1} parent=19 // pred_check
          %p118 = pneg %p56
        $region22: #{tpu_custom_call.1} parent=19 // pred_check_branch
          %120 = sbr.rel (%p118) target = $region24
        $region23: #{tpu_custom_call.1} parent=19 // pred_region
          %s121 = sand.u32 %s46, 1
          %s122 = scalar_lea.sflag [#allocation6], %s121
          %s123 = sand.u32 %s46, 1
          %s124 = smul.addr %s123, 8
          %s125 = scalar_lea.vmem [#allocation5], %s124
          %s127 = ssub.s32 128, 128
          %128 = vsyncadd %s122, %s127
          %s129 = smul.addr %s15, 128
          %s130 = scalar_lea.hbm %s1, %s129
          %s132 = sshll.u32 %s125, 4
          %s133 = int_to_ptr.vmem [resolvable:$true] %s132
          %135 = dma.hbm_to_vmem [thread:$0]  %s130, 128, %s133, %s122
        $region24: #{tpu_custom_call.1} parent=19 // pred_fallthru
          _
      $region20: #{tpu_custom_call.1} parent=5 // pred_fallthru
        _
      %p136 = scmp.le.s32.totalorder 1, %s15
      %p137 = scmp.lt.s32.totalorder %s15, 3
      %p138 = pnand %p136, %p137
      %p139 = pneg %p138
      // Predicated region
      $region25: #{tpu_custom_call.1} parent=5 // pred_check
        _
      $region26: #{tpu_custom_call.1} parent=5 // pred_check_branch
        %141 = sbr.rel (%p138) target = $region28
      $region27: #{tpu_custom_call.1} parent=5 // pred_region
        %s142 = ssub.s32 %s15, 1
        // Predicated region
        $region29: #{tpu_custom_call.1} parent=27 // pred_check
          %p143 = pneg %p36
        $region30: #{tpu_custom_call.1} parent=27 // pred_check_branch
          %145 = sbr.rel (%p143) target = $region32
        $region31: #{tpu_custom_call.1} parent=27 // pred_region
          %146 = dma.done [#allocation3], 128
        $region32: #{tpu_custom_call.1} parent=27 // pred_fallthru
          _
        %s147 = sand.u32 %s49, 1
        %s148 = scalar_lea.sflag [#allocation6], %s147
        %s149 = sand.u32 %s49, 1
        %s150 = smul.addr %s149, 8
        %s151 = scalar_lea.vmem [#allocation5], %s150
        // Predicated region
        $region33: #{tpu_custom_call.1} parent=27 // pred_check
          %p152 = pneg %p62
        $region34: #{tpu_custom_call.1} parent=27 // pred_check_branch
          %154 = sbr.rel (%p152) target = $region36
        $region35: #{tpu_custom_call.1} parent=27 // pred_region
          %155 = dma.done %s148, 128
        $region36: #{tpu_custom_call.1} parent=27 // pred_fallthru
          _
        %p156 = pneg %p36
        %p157 = pneg %p33
        %s158 = sand.u32 %s49, 1
        %s159 = scalar_lea.sflag [#allocation6], %s158
        %s160 = sand.u32 %s49, 1
        %s161 = smul.addr %s160, 8
        %s162 = scalar_lea.vmem [#allocation5], %s161
        %p163 = pneg %p62
        %p164 = pneg %p59
        %p165 = pneg %p88
        %p166 = pneg %p85
        %s167 = sand.u32 %s75, 1
        %s168 = scalar_lea.sflag [#allocation4], %s167
        %s169 = sand.u32 %s75, 1
        %s170 = smul.addr %s169, 8
        %s171 = scalar_lea.vmem [#allocation7], %s170
        %v172 = vld [vmem:[%s151] sm:$0xff]
        %v173 = vld [vmem:[#allocation2] sm:$0xff]
        %v174 = vadd.f32 %v172, %v173
        %175 = vst [vmem:[%s171] sm:$0xff] %v174
        %s176 = sand.u32 %s75, 1
        %s177 = scalar_lea.sflag [#allocation4], %s176
        %s178 = sand.u32 %s75, 1
        %s179 = smul.addr %s178, 8
        %s180 = scalar_lea.vmem [#allocation7], %s179
        // Predicated region
        $region37: #{tpu_custom_call.1} parent=27 // pred_check
          %p181 = pneg %p85
        $region38: #{tpu_custom_call.1} parent=27 // pred_check_branch
          %183 = sbr.rel (%p181) target = $region40
        $region39: #{tpu_custom_call.1} parent=27 // pred_region
          %s185 = ssub.s32 128, 128
          %186 = vsyncadd %s177, %s185
          %s187 = smul.addr %s20, 128
          %s188 = scalar_lea.hbm %s2, %s187
          %s190 = sshll.u32 %s180, 4
          %s191 = int_to_ptr.vmem [resolvable:$true] %s190
          %193 = dma.vmem_to_hbm [thread:$0]  %s191, 128, %s188, %s177
        $region40: #{tpu_custom_call.1} parent=27 // pred_fallthru
          _
      $region28: #{tpu_custom_call.1} parent=5 // pred_fallthru
        _
      %p194 = scmp.le.s32.totalorder 2, %s15
      // Predicated region
      $region41: #{tpu_custom_call.1} parent=5 // pred_check
        %p195 = pneg %p194
      $region42: #{tpu_custom_call.1} parent=5 // pred_check_branch
        %197 = sbr.rel (%p195) target = $region44
      $region43: #{tpu_custom_call.1} parent=5 // pred_region
        %s198 = ssub.s32 %s15, 2
        // Predicated region
        $region45: #{tpu_custom_call.1} parent=43 // pred_check
          %p199 = pneg %p91
        $region46: #{tpu_custom_call.1} parent=43 // pred_check_branch
          %201 = sbr.rel (%p199) target = $region48
        $region47: #{tpu_custom_call.1} parent=43 // pred_region
          %s202 = sand.u32 %s76, 1
          %s203 = scalar_lea.sflag [#allocation4], %s202
          %s204 = sand.u32 %s76, 1
          %s205 = smul.addr %s204, 8
          %s206 = scalar_lea.vmem [#allocation7], %s205
          %207 = dma.done %s203, 128
        $region48: #{tpu_custom_call.1} parent=43 // pred_fallthru
          _
      $region44: #{tpu_custom_call.1} parent=5 // pred_fallthru
        _
    $region6: #{tpu_custom_call.1} parent=1 // loop_footer
      %s19 = sadd.s32 1, %s15
    $region7: #{tpu_custom_call.1} parent=1 // loop_footer_branch
      %14 = sbr.rel target = $region3
    $region8: #{tpu_custom_call.1} parent=1 // loop_exit
      _
    %208 = vsyncpa [#allocation3], 1
    %s209 = scalar_lea.sflag [#allocation3], 1
    %210 = vsyncpa %s209, 1
    %211 = vsyncpa [#allocation6], 1
    %s212 = scalar_lea.sflag [#allocation6], 1
    %213 = vsyncpa %s212, 1
    %214 = vsyncpa [#allocation4], 1
    %s215 = scalar_lea.sflag [#allocation4], 1
    %216 = vsyncpa %s215, 1

// kernel: tpu_custom_call.1
$region0: #{tpu_custom_call.1}
  #allocation0 [shape = 'u32[]', space=smem, size = 0x4, offset = 0x4, fixed_abs, tag = 'smem constant byte address 0x4 - core index']
  #allocation1 [shape = 'u32[144,128]{1,0:T(1,128)}', space=vmem, size = 0x12000, scoped, tag = 'internal scratch']
  %s0 = inlined_call_operand.hbm [shape: f32[1,256], index: 0, kind: input, shape index: {}]
  %s1 = inlined_call_operand.hbm [shape: f32[256,256], index: 1, kind: input, shape index: {}]
  %s2 = inlined_call_operand.vmem [shape: f32[1,256], index: 2, kind: input, shape index: {}]
  %s3 = inlined_call_operand.vmem [shape: f32[1,256], index: 3, kind: input, shape index: {}]
  %s4 = inlined_call_operand.hbm [shape: f32[1,256], index: 4, kind: output, shape index: {}]
  %s5 = sld [smem:[#allocation0]]
  $region34: #{tpu_custom_call.1} parent=0
    _
  %s7 = ssub.s32 1, %s5
  %s8 = scalar_select 0, %s7, %s5
  $region1: #{tpu_custom_call.1} parent=0
    #allocation2 [shape = 'u8[1024]{0}', space=vmem, size = 0x400, scoped, tag = 'input window, operand 0, single buffered']
    #allocation3 [shape = 's32[1]{0}', space=sflag, size = 0x4, scoped, tag = 'scoped memory for tpu_custom_call.1']
    #allocation4 [shape = 's32[1]{0}', space=sflag, size = 0x4, scoped, tag = 'scoped memory for tpu_custom_call.1']
    #allocation5 [shape = 'u8[262144]{0}', space=vmem, size = 0x40000, scoped, tag = 'input window, operand 1, single buffered']
    #allocation6 [shape = 's32[1]{0}', space=sflag, size = 0x4, scoped, tag = 'scoped memory for tpu_custom_call.1']
    #allocation7 [shape = 'u8[1024]{0}', space=vmem, size = 0x400, scoped, tag = 'output window, operand 0, single buffered']
    %9 = vsyncpa [#allocation3], 0
    %10 = vsyncpa [#allocation6], 0
    %11 = vsyncpa [#allocation4], 0
    // Predicated region
    $region2: #{tpu_custom_call.1} parent=1 // pred_check
      _
    $region3: #{tpu_custom_call.1} parent=1 // pred_check_branch
      %13 = sbr.rel (0) target = $region5
    $region4: #{tpu_custom_call.1} parent=1 // pred_region
      %s15 = ssub.s32 32, 32
      %16 = vsyncadd [#allocation3], %s15
      %s18 = sshll.u32 [#allocation2], 4
      %s19 = int_to_ptr.vmem [resolvable:$true] %s18
      %21 = dma.hbm_to_vmem [thread:$0]  %s0, 32, %s19, [#allocation3]
    $region5: #{tpu_custom_call.1} parent=1 // pred_fallthru
      _
    // Predicated region
    $region6: #{tpu_custom_call.1} parent=1 // pred_check
      _
    $region7: #{tpu_custom_call.1} parent=1 // pred_check_branch
      %23 = sbr.rel (0) target = $region9
    $region8: #{tpu_custom_call.1} parent=1 // pred_region
      %s25 = ssub.s32 8192, 8192
      %26 = vsyncadd [#allocation6], %s25
      %s27 = sshll.u32 [#allocation5], 4
      %s28 = int_to_ptr.vmem [resolvable:$true] %s27
      %33 = dma.hbm_to_vmem [thread:$0]  %s1, 8192, %s28, [#allocation6], 256, 256, 16
    $region9: #{tpu_custom_call.1} parent=1 // pred_fallthru
      _
    // Predicated region
    $region10: #{tpu_custom_call.1} parent=1 // pred_check
      _
    $region11: #{tpu_custom_call.1} parent=1 // pred_check_branch
      %35 = sbr.rel (0) target = $region13
    $region12: #{tpu_custom_call.1} parent=1 // pred_region
      _
    $region13: #{tpu_custom_call.1} parent=1 // pred_fallthru
      _
    // Predicated region
    $region14: #{tpu_custom_call.1} parent=1 // pred_check
      _
    $region15: #{tpu_custom_call.1} parent=1 // pred_check_branch
      %37 = sbr.rel (0) target = $region17
    $region16: #{tpu_custom_call.1} parent=1 // pred_region
      _
    $region17: #{tpu_custom_call.1} parent=1 // pred_fallthru
      _
    // Predicated region
    $region18: #{tpu_custom_call.1} parent=1 // pred_check
      _
    $region19: #{tpu_custom_call.1} parent=1 // pred_check_branch
      %39 = sbr.rel (0) target = $region21
    $region20: #{tpu_custom_call.1} parent=1 // pred_region
      %40 = dma.done [#allocation3], 32
    $region21: #{tpu_custom_call.1} parent=1 // pred_fallthru
      _
    // Predicated region
    $region22: #{tpu_custom_call.1} parent=1 // pred_check
      _
    $region23: #{tpu_custom_call.1} parent=1 // pred_check_branch
      %42 = sbr.rel (0) target = $region25
    $region24: #{tpu_custom_call.1} parent=1 // pred_region
      %43 = dma.done [#allocation6], 8192
    $region25: #{tpu_custom_call.1} parent=1 // pred_fallthru
      _
    %v44 = vld [vmem:[#allocation2] sm:$0x3]
    %v45 = vld [vmem:[#allocation5] sm:$0xff]
    %v46 = vld [vmem:[#allocation5 + $0x8] sm:$0xff]
    %v47 = vld [vmem:[#allocation5 + $0x10] sm:$0xff]
    %v48 = vld [vmem:[#allocation5 + $0x18] sm:$0xff]
    %v49 = vld [vmem:[#allocation5 + $0x20] sm:$0xff]
    %v50 = vld [vmem:[#allocation5 + $0x28] sm:$0xff]
    %v51 = vld [vmem:[#allocation5 + $0x30] sm:$0xff]
    %v52 = vld [vmem:[#allocation5 + $0x38] sm:$0xff]
    %v53 = vld [vmem:[#allocation5 + $0x40] sm:$0xff]
    %v54 = vld [vmem:[#allocation5 + $0x48] sm:$0xff]
    %v55 = vld [vmem:[#allocation5 + $0x50] sm:$0xff]
    %v56 = vld [vmem:[#allocation5 + $0x58] sm:$0xff]
    %v57 = vld [vmem:[#allocation5 + $0x60] sm:$0xff]
    %v58 = vld [vmem:[#allocation5 + $0x68] sm:$0xff]
    %v59 = vld [vmem:[#allocation5 + $0x70] sm:$0xff]
    %v60 = vld [vmem:[#allocation5 + $0x78] sm:$0xff]
    %v61 = vld [vmem:[#allocation5 + $0x80] sm:$0xff]
    %v62 = vld [vmem:[#allocation5 + $0x88] sm:$0xff]
    %v63 = vld [vmem:[#allocation5 + $0x90] sm:$0xff]
    %v64 = vld [vmem:[#allocation5 + $0x98] sm:$0xff]
    %v65 = vld [vmem:[#allocation5 + $0xa0] sm:$0xff]
    %v66 = vld [vmem:[#allocation5 + $0xa8] sm:$0xff]
    %v67 = vld [vmem:[#allocation5 + $0xb0] sm:$0xff]
    %v68 = vld [vmem:[#allocation5 + $0xb8] sm:$0xff]
    %v69 = vld [vmem:[#allocation5 + $0xc0] sm:$0xff]
    %v70 = vld [vmem:[#allocation5 + $0xc8] sm:$0xff]
    %v71 = vld [vmem:[#allocation5 + $0xd0] sm:$0xff]
    %v72 = vld [vmem:[#allocation5 + $0xd8] sm:$0xff]
    %v73 = vld [vmem:[#allocation5 + $0xe0] sm:$0xff]
    %v74 = vld [vmem:[#allocation5 + $0xe8] sm:$0xff]
    %v75 = vld [vmem:[#allocation5 + $0xf0] sm:$0xff]
    %v76 = vld [vmem:[#allocation5 + $0xf8] sm:$0xff]
    %v77 = vld [vmem:[#allocation5 + $0x100] sm:$0xff]
    %v78 = vld [vmem:[#allocation5 + $0x108] sm:$0xff]
    %v79 = vld [vmem:[#allocation5 + $0x110] sm:$0xff]
    %v80 = vld [vmem:[#allocation5 + $0x118] sm:$0xff]
    %v81 = vld [vmem:[#allocation5 + $0x120] sm:$0xff]
    %v82 = vld [vmem:[#allocation5 + $0x128] sm:$0xff]
    %v83 = vld [vmem:[#allocation5 + $0x130] sm:$0xff]
    %v84 = vld [vmem:[#allocation5 + $0x138] sm:$0xff]
    %v85 = vld [vmem:[#allocation5 + $0x140] sm:$0xff]
    %v86 = vld [vmem:[#allocation5 + $0x148] sm:$0xff]
    %v87 = vld [vmem:[#allocation5 + $0x150] sm:$0xff]
    %v88 = vld [vmem:[#allocation5 + $0x158] sm:$0xff]
    %v89 = vld [vmem:[#allocation5 + $0x160] sm:$0xff]
    %v90 = vld [vmem:[#allocation5 + $0x168] sm:$0xff]
    %v91 = vld [vmem:[#allocation5 + $0x170] sm:$0xff]
    %v92 = vld [vmem:[#allocation5 + $0x178] sm:$0xff]
    %v93 = vld [vmem:[#allocation5 + $0x180] sm:$0xff]
    %v94 = vld [vmem:[#allocation5 + $0x188] sm:$0xff]
    %v95 = vld [vmem:[#allocation5 + $0x190] sm:$0xff]
    %v96 = vld [vmem:[#allocation5 + $0x198] sm:$0xff]
    %v97 = vld [vmem:[#allocation5 + $0x1a0] sm:$0xff]
    %v98 = vld [vmem:[#allocation5 + $0x1a8] sm:$0xff]
    %v99 = vld [vmem:[#allocation5 + $0x1b0] sm:$0xff]
    %v100 = vld [vmem:[#allocation5 + $0x1b8] sm:$0xff]
    %v101 = vld [vmem:[#allocation5 + $0x1c0] sm:$0xff]
    %v102 = vld [vmem:[#allocation5 + $0x1c8] sm:$0xff]
    %v103 = vld [vmem:[#allocation5 + $0x1d0] sm:$0xff]
    %v104 = vld [vmem:[#allocation5 + $0x1d8] sm:$0xff]
    %v105 = vld [vmem:[#allocation5 + $0x1e0] sm:$0xff]
    %v106 = vld [vmem:[#allocation5 + $0x1e8] sm:$0xff]
    %v107 = vld [vmem:[#allocation5 + $0x1f0] sm:$0xff]
    %v108 = vld [vmem:[#allocation5 + $0x1f8] sm:$0xff]
    %v110 = vlaneseq
    %v111 = vshrl.u32 %v110, 7
    %v112 = vsub.s32 0, %v111
    %v113 = vrot.slane %v44, %v112
    %v114 = vlaneseq
    %v115 = vshrl.u32 %v114, 7
    %v116 = vsub.s32 1, %v115
    %v117 = vrot.slane %v44, %v116
    %120 = vmatprep.subr.mxu0 %v46
    %121 = vmatpush1.msra.mxu0 %v45
    %122 = vmatprep.subr.mxu0 %v48
    %123 = vmatpush1.msra.mxu0 %v47
    %124 = vmatprep.subr.mxu0 %v50
    %125 = vmatpush1.msra.mxu0 %v49
    %126 = vmatprep.subr.mxu0 %v52
    %127 = vmatpush1.msra.mxu0 %v51
    %128 = vmatprep.subr.mxu0 %v54
    %129 = vmatpush1.msra.mxu0 %v53
    %130 = vmatprep.subr.mxu0 %v56
    %131 = vmatpush1.msra.mxu0 %v55
    %132 = vmatprep.subr.mxu0 %v58
    %133 = vmatpush1.msra.mxu0 %v57
    %134 = vmatprep.subr.mxu0 %v60
    %135 = vmatpush1.msra.mxu0 %v59
    %136 = vmatprep.subr.mxu0 %v62
    %137 = vmatpush1.msra.mxu0 %v61
    %138 = vmatprep.subr.mxu0 %v64
    %139 = vmatpush1.msra.mxu0 %v63
    %140 = vmatprep.subr.mxu0 %v66
    %141 = vmatpush1.msra.mxu0 %v65
    %142 = vmatprep.subr.mxu0 %v68
    %143 = vmatpush1.msra.mxu0 %v67
    %144 = vmatprep.subr.mxu0 %v70
    %145 = vmatpush1.msra.mxu0 %v69
    %146 = vmatprep.subr.mxu0 %v72
    %147 = vmatpush1.msra.mxu0 %v71
    %148 = vmatprep.subr.mxu0 %v74
    %149 = vmatpush1.msra.mxu0 %v73
    %150 = vmatprep.subr.mxu0 %v76
    %151 = vmatpush1.msra.mxu0 %v75
    %152 = vmatprep.subr.mxu0 %v78
    %153 = vmatpush1.msra.mxu0 %v77
    %154 = vmatprep.subr.mxu0 %v80
    %155 = vmatpush1.msra.mxu0 %v79
    %156 = vmatprep.subr.mxu0 %v82
    %157 = vmatpush1.msra.mxu0 %v81
    %158 = vmatprep.subr.mxu0 %v84
    %159 = vmatpush1.msra.mxu0 %v83
    %160 = vmatprep.subr.mxu0 %v86
    %161 = vmatpush1.msra.mxu0 %v85
    %162 = vmatprep.subr.mxu0 %v88
    %163 = vmatpush1.msra.mxu0 %v87
    %164 = vmatprep.subr.mxu0 %v90
    %165 = vmatpush1.msra.mxu0 %v89
    %166 = vmatprep.subr.mxu0 %v92
    %167 = vmatpush1.msra.mxu0 %v91
    %168 = vmatprep.subr.mxu0 %v94
    %169 = vmatpush1.msra.mxu0 %v93
    %170 = vmatprep.subr.mxu0 %v96
    %171 = vmatpush1.msra.mxu0 %v95
    %172 = vmatprep.subr.mxu0 %v98
    %173 = vmatpush1.msra.mxu0 %v97
    %174 = vmatprep.subr.mxu0 %v100
    %175 = vmatpush1.msra.mxu0 %v99
    %176 = vmatprep.subr.mxu0 %v102
    %177 = vmatpush1.msra.mxu0 %v101
    %178 = vmatprep.subr.mxu0 %v104
    %179 = vmatpush1.msra.mxu0 %v103
    %180 = vmatprep.subr.mxu0 %v106
    %181 = vmatpush1.msra.mxu0 %v105
    %182 = vmatprep.subr.mxu0 %v108
    %183 = vmatpush1.msra.mxu0 %v107
    %184 = vmatprep.mubr.f32.mxu0 %v117
    %185 = vmatmul.mubr.f32.gmra.mrb[0].mxu0 %v113
    %v186 = vpop.f32.mrb[0].mxu0
    %v187 = vadd.f32 0.0, %v186
    %v188 = vpop.f32.mrb[0].mxu0
    %v189 = vadd.f32 0.0, %v188
    %190 = vdwg.mxu0
    %v191 = vld [vmem:[%s2] sm:$0x3]
    %v192 = vmul.f32 %v191, %v44
    %v195 = vcombine.low %v187, %v189
    %v197 = vunpack.c.l.s4 1966171168
    %v198 = vunpack.c.0.s8 %v197
    %v199 = vlaneseq
    %v200 = vshrl.u32 %v199, 7
    %v201 = vsub.s32 %v198, %v200
    %v202 = vrot.slane %v195, %v201
    %v204 = vunpack.c.l.s4 1966171168
    %v205 = vunpack.c.0.s8 %v204
    %v206 = vlaneseq
    %v207 = vshrl.u32 %v206, 7
    %v208 = vsub.s32 %v205, %v207
    %v209 = vrot.slane %v202, %v208
    %v211 = vadd.f32 %v192, %v209
    %v212 = vld [vmem:[%s3] sm:$0x3]
    %v213 = vadd.f32 %v211, %v212
    %v214 = vlaneseq
    %vm215 = vcmp.ge.s32.totalorder %v214, 0
    %vm216 = vcmp.lt.s32.totalorder %v214, 256
    %vm217 = vmand %vm215, %vm216
    %218 = vst.msk [vmem:[#allocation7] sm:$0x3] %vm217, %v213
    // Predicated region
    $region26: #{tpu_custom_call.1} parent=1 // pred_check
      _
    $region27: #{tpu_custom_call.1} parent=1 // pred_check_branch
      %220 = sbr.rel (0) target = $region29
    $region28: #{tpu_custom_call.1} parent=1 // pred_region
      %s222 = ssub.s32 32, 32
      %223 = vsyncadd [#allocation4], %s222
      %s225 = sshll.u32 [#allocation7], 4
      %s226 = int_to_ptr.vmem [resolvable:$true] %s225
      %228 = dma.vmem_to_hbm [thread:$0]  %s226, 32, %s4, [#allocation4]
    $region29: #{tpu_custom_call.1} parent=1 // pred_fallthru
      _
    // Predicated region
    $region30: #{tpu_custom_call.1} parent=1 // pred_check
      _
    $region31: #{tpu_custom_call.1} parent=1 // pred_check_branch
      %230 = sbr.rel (0) target = $region33
    $region32: #{tpu_custom_call.1} parent=1 // pred_region
      %231 = dma.done [#allocation4], 32
    $region33: #{tpu_custom_call.1} parent=1 // pred_fallthru
      _
    %232 = vsyncpa [#allocation3], 1
    %233 = vsyncpa [#allocation6], 1
    %234 = vsyncpa [#allocation4], 1

</llo_original>
